<compile_context>
chip_gen: v7x
topology: tpu7x:2x2x1
jax: 0.10.0
libtpu: 0.0.40
codegen_flags: <defaults>
</compile_context>

<pallas_src>
import functools
import math

import jax
import jax.numpy as jnp
from jax import lax
from jax.experimental import pallas as pl
from jax.experimental.pallas import tpu as pltpu


def _self_attention_kernel(v_ref, k_ref, q_ref, bias_ref,
                           wv_ref, wk_ref, wq_ref, wo_ref, bo_ref,
                           out_ref, *, bb, lq, lk, lv):
    # ---- batch-fused input projections: one MXU matmul over bb*L rows each,
    #      bf16 operands, f32 accumulation.  1/sqrt(E) is folded into wq_ref.
    V = jnp.dot(v_ref[...], wv_ref[...], preferred_element_type=jnp.float32)  # (bb*lv, E)
    K = jnp.dot(k_ref[...], wk_ref[...], preferred_element_type=jnp.float32)  # (bb*lk, E)
    Q = jnp.dot(q_ref[...], wq_ref[...], preferred_element_type=jnp.float32)  # (bb*lq, E)
    V16 = V.astype(jnp.bfloat16)
    K16 = K.astype(jnp.bfloat16)
    Q16 = Q.astype(jnp.bfloat16)

    ctxs = []
    for b in range(bb):  # static (unrolled) loop over the batch tile
        qb = Q16[b * lq:(b + 1) * lq, :]          # (lq, E)
        kb = K16[b * lk:(b + 1) * lk, :]          # (lk, E)
        vb = V16[b * lv:(b + 1) * lv, :]          # (lv, E)

        # energy = (q Wq / sqrt(E)) @ (k Wk)^T  -- contract over embed dim.
        energy = lax.dot_general(qb, kb, (((1,), (1,)), ((), ())),
                                 preferred_element_type=jnp.float32)  # (lq, lk)
        energy = energy + bias_ref[b]             # additive mask bias (0 / -1e20)

        # Numerically stable softmax in f32; reciprocal goes to the EUP.
        row_max = jnp.max(energy, axis=-1, keepdims=True)
        p = jnp.exp(energy - row_max)
        denom = jnp.sum(p, axis=-1, keepdims=True)
        attn = p * pl.reciprocal(denom, approx=True)

        ctxs.append(jnp.dot(attn.astype(jnp.bfloat16), vb,
                            preferred_element_type=jnp.float32))      # (lq, E) f32

    # ---- batch-fused output projection + bias, single contiguous store.
    ctx_all = jnp.concatenate(ctxs, axis=0)                           # (bb*lq, E) f32
    out = jnp.dot(ctx_all.astype(jnp.bfloat16), wo_ref[...],
                  preferred_element_type=jnp.float32) + bo_ref[...]
    out_ref[...] = out.astype(out_ref.dtype)


def self_attention(values, keys, query, mask, params, *, batch_block=None):
    """values/keys/query: (N, L, E) f32; mask: (N, 1, Lq, Lk) int (0/1)."""
    N, Lq, E = query.shape
    Lk = keys.shape[1]
    Lv = values.shape[1]

    if batch_block is None:
        # Largest divisor of N up to 8 batch elements per grid step.
        batch_block = max(d for d in range(1, min(N, 8) + 1) if N % d == 0)
    nb = batch_block
    assert N % nb == 0

    cdt = jnp.bfloat16
    scale = 1.0 / math.sqrt(E)

    # Pre-transpose weights so the kernel does x @ W_t (PyTorch: x @ W.T);
    # fold the softmax scale into Wq^T; cast MXU operands to bf16.
    wv_t = params["wv"].T.astype(cdt)
    wk_t = params["wk"].T.astype(cdt)
    wq_t = (params["wq"].T * jnp.float32(scale)).astype(cdt)
    wo_t = params["wo"].T.astype(cdt)
    bo = params["bo"].reshape(1, E).astype(jnp.float32)

    # Flatten batch into the matmul row dimension for the projections.
    v2d = values.reshape(N * Lv, E).astype(cdt)
    k2d = keys.reshape(N * Lk, E).astype(cdt)
    q2d = query.reshape(N * Lq, E).astype(cdt)

    # Convert the 0/1 mask to an additive f32 bias once on the host side.
    bias = jnp.where(mask[:, 0] == 0, jnp.float32(-1e20), jnp.float32(0.0))  # (N, Lq, Lk)

    kernel = functools.partial(_self_attention_kernel, bb=nb, lq=Lq, lk=Lk, lv=Lv)
    const2d = lambda r, c: pl.BlockSpec((r, c), lambda i: (0, 0))

    out2d = pl.pallas_call(
        kernel,
        out_shape=jax.ShapeDtypeStruct((N * Lq, E), jnp.float32),
        grid_spec=pltpu.PrefetchScalarGridSpec(
            num_scalar_prefetch=0,
            grid=(N // nb,),
            in_specs=[
                pl.BlockSpec((nb * Lv, E), lambda i: (i, 0)),      # values rows
                pl.BlockSpec((nb * Lk, E), lambda i: (i, 0)),      # keys rows
                pl.BlockSpec((nb * Lq, E), lambda i: (i, 0)),      # query rows
                pl.BlockSpec((nb, Lq, Lk), lambda i: (i, 0, 0)),   # mask bias
                const2d(E, E),                                     # Wv^T
                const2d(E, E),                                     # Wk^T
                const2d(E, E),                                     # Wq^T * 1/sqrt(E)
                const2d(E, E),                                     # Wo^T
                const2d(1, E),                                     # b_o
            ],
            out_specs=pl.BlockSpec((nb * Lq, E), lambda i: (i, 0)),
        ),
        compiler_params=pltpu.CompilerParams(
            dimension_semantics=("parallel",)),
    )(v2d, k2d, q2d, bias, wv_t, wk_t, wq_t, wo_t, bo)

    return out2d.reshape(N, Lq, E)


def _reference(values, keys, query, mask, params):
    """Pure-JAX f32 reference mirroring the PyTorch forward (heads == 1)."""
    E = query.shape[-1]
    V = values @ params["wv"].T
    K = keys @ params["wk"].T
    Q = query @ params["wq"].T
    energy = jnp.einsum("nqd,nkd->nqk", Q, K)
    energy = jnp.where(mask[:, 0] == 0, -1e20, energy)
    attn = jax.nn.softmax(energy / math.sqrt(E), axis=-1)
    out = jnp.einsum("nqk,nkd->nqd", attn, V)
    return out @ params["wo"].T + params["bo"]


if __name__ == "__main__":
    embed_size = 32
    heads = 1            # heads * head_dim == embed_size with head_dim == embed_size
    N, Lq, Lk, Lv = 2, 8, 8, 8

    key = jax.random.PRNGKey(0)
    ks = jax.random.split(key, 9)

    bound = 1.0 / math.sqrt(embed_size)
    params = {
        "wv": jax.random.uniform(ks[0], (embed_size, embed_size), jnp.float32, -bound, bound),
        "wk": jax.random.uniform(ks[1], (embed_size, embed_size), jnp.float32, -bound, bound),
        "wq": jax.random.uniform(ks[2], (embed_size, embed_size), jnp.float32, -bound, bound),
        "wo": jax.random.uniform(ks[3], (embed_size, embed_size), jnp.float32, -bound, bound),
        "bo": jax.random.uniform(ks[4], (embed_size,), jnp.float32, -bound, bound),
    }

    values = jax.random.normal(ks[5], (N, Lv, embed_size), jnp.float32)
    keys_in = jax.random.normal(ks[6], (N, Lk, embed_size), jnp.float32)
    query = jax.random.normal(ks[7], (N, Lq, embed_size), jnp.float32)
    # Causal-style 0/1 mask of shape (N, 1, Lq, Lk).
    mask = jnp.tril(jnp.ones((Lq, Lk), jnp.int32))[None, None].repeat(N, axis=0)

    out = self_attention(values, keys_in, query, mask, params)
    out = jax.block_until_ready(out)

    ref = _reference(values, keys_in, query, mask, params)
    assert out.shape == (N, Lq, embed_size)
    # bf16 MXU operands with f32 accumulation -> relaxed tolerance vs f32 ref.
    assert jnp.allclose(out, ref, atol=5e-2, rtol=5e-2), "mismatch vs reference"

    print("KERNEL_OK")
</pallas_src>

<mosaic_0001>
module attributes {stable_mosaic.version = 11 : i64} {
  func.func @_self_attention_kernel(%arg0: i32, %arg1: memref<16x32xbf16, #tpu.memory_space<vmem>>, %arg2: memref<16x32xbf16, #tpu.memory_space<vmem>>, %arg3: memref<16x32xbf16, #tpu.memory_space<vmem>>, %arg4: memref<2x8x8xf32, #tpu.memory_space<vmem>>, %arg5: memref<32x32xbf16, #tpu.memory_space<vmem>>, %arg6: memref<32x32xbf16, #tpu.memory_space<vmem>>, %arg7: memref<32x32xbf16, #tpu.memory_space<vmem>>, %arg8: memref<32x32xbf16, #tpu.memory_space<vmem>>, %arg9: memref<1x32xf32, #tpu.memory_space<vmem>>, %arg10: memref<16x32xf32, #tpu.memory_space<vmem>>) attributes {dimension_semantics = [#tpu.dimension_semantics<parallel>], iteration_bounds = array<i64: 1>, scalar_prefetch = 0 : i64, scratch_operands = 0 : i64, tpu.core_type = #tpu.core_type<tc>, window_params = [{transform_indices = @transform_0, window_bounds = array<i64: 16, 32>}, {transform_indices = @transform_1, window_bounds = array<i64: 16, 32>}, {transform_indices = @transform_2, window_bounds = array<i64: 16, 32>}, {transform_indices = @transform_3, window_bounds = array<i64: 2, 8, 8>}, {pipeline_mode = #tpu.pipeline_mode<synchronous>, transform_indices = @transform_4, window_bounds = array<i64: 32, 32>}, {pipeline_mode = #tpu.pipeline_mode<synchronous>, transform_indices = @transform_5, window_bounds = array<i64: 32, 32>}, {pipeline_mode = #tpu.pipeline_mode<synchronous>, transform_indices = @transform_6, window_bounds = array<i64: 32, 32>}, {pipeline_mode = #tpu.pipeline_mode<synchronous>, transform_indices = @transform_7, window_bounds = array<i64: 32, 32>}, {pipeline_mode = #tpu.pipeline_mode<synchronous>, transform_indices = @transform_8, window_bounds = array<i64: 1, 32>}, {transform_indices = @transform_9, window_bounds = array<i64: 16, 32>}]} {
    %c0 = arith.constant 0 : index
    %c0_0 = arith.constant 0 : index
    %0 = vector.load %arg1[%c0, %c0_0] : memref<16x32xbf16, #tpu.memory_space<vmem>>, vector<16x32xbf16>
    %c0_1 = arith.constant 0 : index
    %c0_2 = arith.constant 0 : index
    %1 = vector.load %arg5[%c0_1, %c0_2] : memref<32x32xbf16, #tpu.memory_space<vmem>>, vector<32x32xbf16>
    %cst = arith.constant dense<0.000000e+00> : vector<16x32xf32>
    %2 = tpu.matmul %0, %1, %cst {dimension_numbers = #tpu.dot_dimension_numbers<[1], [0], [0], [1], [0, 0, 1, 1], [], []>} : vector<16x32xbf16>, vector<32x32xbf16>, vector<16x32xf32> -> vector<16x32xf32>
    %c0_3 = arith.constant 0 : index
    %c0_4 = arith.constant 0 : index
    %3 = vector.load %arg2[%c0_3, %c0_4] : memref<16x32xbf16, #tpu.memory_space<vmem>>, vector<16x32xbf16>
    %c0_5 = arith.constant 0 : index
    %c0_6 = arith.constant 0 : index
    %4 = vector.load %arg6[%c0_5, %c0_6] : memref<32x32xbf16, #tpu.memory_space<vmem>>, vector<32x32xbf16>
    %cst_7 = arith.constant dense<0.000000e+00> : vector<16x32xf32>
    %5 = tpu.matmul %3, %4, %cst_7 {dimension_numbers = #tpu.dot_dimension_numbers<[1], [0], [0], [1], [0, 0, 1, 1], [], []>} : vector<16x32xbf16>, vector<32x32xbf16>, vector<16x32xf32> -> vector<16x32xf32>
    %c0_8 = arith.constant 0 : index
    %c0_9 = arith.constant 0 : index
    %6 = vector.load %arg3[%c0_8, %c0_9] : memref<16x32xbf16, #tpu.memory_space<vmem>>, vector<16x32xbf16>
    %c0_10 = arith.constant 0 : index
    %c0_11 = arith.constant 0 : index
    %7 = vector.load %arg7[%c0_10, %c0_11] : memref<32x32xbf16, #tpu.memory_space<vmem>>, vector<32x32xbf16>
    %cst_12 = arith.constant dense<0.000000e+00> : vector<16x32xf32>
    %8 = tpu.matmul %6, %7, %cst_12 {dimension_numbers = #tpu.dot_dimension_numbers<[1], [0], [0], [1], [0, 0, 1, 1], [], []>} : vector<16x32xbf16>, vector<32x32xbf16>, vector<16x32xf32> -> vector<16x32xf32>
    %9 = arith.truncf %2 : vector<16x32xf32> to vector<16x32xbf16>
    %10 = arith.truncf %5 : vector<16x32xf32> to vector<16x32xbf16>
    %11 = arith.truncf %8 : vector<16x32xf32> to vector<16x32xbf16>
    %12 = vector.extract_strided_slice %11 {offsets = [0, 0], sizes = [8, 32], strides = [1, 1]} : vector<16x32xbf16> to vector<8x32xbf16>
    %13 = vector.extract_strided_slice %10 {offsets = [0, 0], sizes = [8, 32], strides = [1, 1]} : vector<16x32xbf16> to vector<8x32xbf16>
    %14 = vector.extract_strided_slice %9 {offsets = [0, 0], sizes = [8, 32], strides = [1, 1]} : vector<16x32xbf16> to vector<8x32xbf16>
    %cst_13 = arith.constant dense<0.000000e+00> : vector<8x8xf32>
    %15 = tpu.matmul %12, %13, %cst_13 {dimension_numbers = #tpu.dot_dimension_numbers<[1], [1], [0], [0], [0, 0, 1, 0], [], []>} : vector<8x32xbf16>, vector<8x32xbf16>, vector<8x8xf32> -> vector<8x8xf32>
    %c0_14 = arith.constant 0 : index
    %c0_15 = arith.constant 0 : index
    %c0_16 = arith.constant 0 : index
    %16 = vector.load %arg4[%c0_14, %c0_15, %c0_16] : memref<2x8x8xf32, #tpu.memory_space<vmem>>, vector<1x8x8xf32>
    %17 = vector.shape_cast %16 : vector<1x8x8xf32> to vector<8x8xf32>
    %18 = arith.addf %15, %17 : vector<8x8xf32>
    %cst_17 = arith.constant dense<0xFF800000> : vector<8xf32>
    %19 = vector.multi_reduction <maximumf>, %18, %cst_17 [1] : vector<8x8xf32> to vector<8xf32>
    %20 = vector.shape_cast %19 : vector<8xf32> to vector<8x1xf32>
    %21 = vector.broadcast %20 : vector<8x1xf32> to vector<8x8xf32>
    %22 = arith.subf %18, %21 : vector<8x8xf32>
    %23 = math.exp %22 : vector<8x8xf32>
    %cst_18 = arith.constant dense<0.000000e+00> : vector<8xf32>
    %24 = vector.multi_reduction <add>, %23, %cst_18 [1] : vector<8x8xf32> to vector<8xf32>
    %25 = vector.shape_cast %24 : vector<8xf32> to vector<8x1xf32>
    %26 = tpu.reciprocal %25 {approx = true} : vector<8x1xf32> -> vector<8x1xf32>
    %27 = vector.broadcast %26 : vector<8x1xf32> to vector<8x8xf32>
    %28 = arith.mulf %23, %27 : vector<8x8xf32>
    %29 = arith.truncf %28 : vector<8x8xf32> to vector<8x8xbf16>
    %cst_19 = arith.constant dense<0.000000e+00> : vector<8x32xf32>
    %30 = tpu.matmul %29, %14, %cst_19 {dimension_numbers = #tpu.dot_dimension_numbers<[1], [0], [0], [1], [0, 0, 1, 1], [], []>} : vector<8x8xbf16>, vector<8x32xbf16>, vector<8x32xf32> -> vector<8x32xf32>
    %31 = vector.extract_strided_slice %11 {offsets = [8, 0], sizes = [8, 32], strides = [1, 1]} : vector<16x32xbf16> to vector<8x32xbf16>
    %32 = vector.extract_strided_slice %10 {offsets = [8, 0], sizes = [8, 32], strides = [1, 1]} : vector<16x32xbf16> to vector<8x32xbf16>
    %33 = vector.extract_strided_slice %9 {offsets = [8, 0], sizes = [8, 32], strides = [1, 1]} : vector<16x32xbf16> to vector<8x32xbf16>
    %cst_20 = arith.constant dense<0.000000e+00> : vector<8x8xf32>
    %34 = tpu.matmul %31, %32, %cst_20 {dimension_numbers = #tpu.dot_dimension_numbers<[1], [1], [0], [0], [0, 0, 1, 0], [], []>} : vector<8x32xbf16>, vector<8x32xbf16>, vector<8x8xf32> -> vector<8x8xf32>
    %c1 = arith.constant 1 : index
    %c0_21 = arith.constant 0 : index
    %c0_22 = arith.constant 0 : index
    %35 = vector.load %arg4[%c1, %c0_21, %c0_22] : memref<2x8x8xf32, #tpu.memory_space<vmem>>, vector<1x8x8xf32>
    %36 = vector.shape_cast %35 : vector<1x8x8xf32> to vector<8x8xf32>
    %37 = arith.addf %34, %36 : vector<8x8xf32>
    %cst_23 = arith.constant dense<0xFF800000> : vector<8xf32>
    %38 = vector.multi_reduction <maximumf>, %37, %cst_23 [1] : vector<8x8xf32> to vector<8xf32>
    %39 = vector.shape_cast %38 : vector<8xf32> to vector<8x1xf32>
    %40 = vector.broadcast %39 : vector<8x1xf32> to vector<8x8xf32>
    %41 = arith.subf %37, %40 : vector<8x8xf32>
    %42 = math.exp %41 : vector<8x8xf32>
    %cst_24 = arith.constant dense<0.000000e+00> : vector<8xf32>
    %43 = vector.multi_reduction <add>, %42, %cst_24 [1] : vector<8x8xf32> to vector<8xf32>
    %44 = vector.shape_cast %43 : vector<8xf32> to vector<8x1xf32>
    %45 = tpu.reciprocal %44 {approx = true} : vector<8x1xf32> -> vector<8x1xf32>
    %46 = vector.broadcast %45 : vector<8x1xf32> to vector<8x8xf32>
    %47 = arith.mulf %42, %46 : vector<8x8xf32>
    %48 = arith.truncf %47 : vector<8x8xf32> to vector<8x8xbf16>
    %cst_25 = arith.constant dense<0.000000e+00> : vector<8x32xf32>
    %49 = tpu.matmul %48, %33, %cst_25 {dimension_numbers = #tpu.dot_dimension_numbers<[1], [0], [0], [1], [0, 0, 1, 1], [], []>} : vector<8x8xbf16>, vector<8x32xbf16>, vector<8x32xf32> -> vector<8x32xf32>
    %50 = tpu.concatenate %30, %49 in 0 : vector<8x32xf32>, vector<8x32xf32> -> vector<16x32xf32>
    %51 = arith.truncf %50 : vector<16x32xf32> to vector<16x32xbf16>
    %c0_26 = arith.constant 0 : index
    %c0_27 = arith.constant 0 : index
    %52 = vector.load %arg8[%c0_26, %c0_27] : memref<32x32xbf16, #tpu.memory_space<vmem>>, vector<32x32xbf16>
    %cst_28 = arith.constant dense<0.000000e+00> : vector<16x32xf32>
    %53 = tpu.matmul %51, %52, %cst_28 {dimension_numbers = #tpu.dot_dimension_numbers<[1], [0], [0], [1], [0, 0, 1, 1], [], []>} : vector<16x32xbf16>, vector<32x32xbf16>, vector<16x32xf32> -> vector<16x32xf32>
    %c0_29 = arith.constant 0 : index
    %c0_30 = arith.constant 0 : index
    %54 = vector.load %arg9[%c0_29, %c0_30] : memref<1x32xf32, #tpu.memory_space<vmem>>, vector<1x32xf32>
    %55 = vector.broadcast %54 : vector<1x32xf32> to vector<16x32xf32>
    %56 = arith.addf %53, %55 : vector<16x32xf32>
    %c0_31 = arith.constant 0 : index
    %c0_32 = arith.constant 0 : index
    %57 = vector.load %arg10[%c0_31, %c0_32] : memref<16x32xf32, #tpu.memory_space<vmem>>, vector<16x32xf32>
    tpu.vector_store %arg10[%c0_31, %c0_32], %56 {strides = array<i32>} : memref<16x32xf32, #tpu.memory_space<vmem>>, vector<16x32xf32>,
    return
  }
  func.func @transform_0(%arg0: i32) -> (i32, i32) {
    %c0_i32 = arith.constant 0 : i32
    %c0_i32_0 = arith.constant 0 : i32
    return %arg0, %c0_i32 : i32, i32
  }
  func.func @transform_1(%arg0: i32) -> (i32, i32) {
    %c0_i32 = arith.constant 0 : i32
    %c0_i32_0 = arith.constant 0 : i32
    return %arg0, %c0_i32 : i32, i32
  }
  func.func @transform_2(%arg0: i32) -> (i32, i32) {
    %c0_i32 = arith.constant 0 : i32
    %c0_i32_0 = arith.constant 0 : i32
    return %arg0, %c0_i32 : i32, i32
  }
  func.func @transform_3(%arg0: i32) -> (i32, i32, i32) {
    %c0_i32 = arith.constant 0 : i32
    %c0_i32_0 = arith.constant 0 : i32
    %c0_i32_1 = arith.constant 0 : i32
    return %arg0, %c0_i32, %c0_i32_0 : i32, i32, i32
  }
  func.func @transform_4(%arg0: i32) -> (i32, i32) {
    %c0_i32 = arith.constant 0 : i32
    %c0_i32_0 = arith.constant 0 : i32
    %c0_i32_1 = arith.constant 0 : i32
    return %c0_i32, %c0_i32_0 : i32, i32
  }
  func.func @transform_5(%arg0: i32) -> (i32, i32) {
    %c0_i32 = arith.constant 0 : i32
    %c0_i32_0 = arith.constant 0 : i32
    %c0_i32_1 = arith.constant 0 : i32
    return %c0_i32, %c0_i32_0 : i32, i32
  }
  func.func @transform_6(%arg0: i32) -> (i32, i32) {
    %c0_i32 = arith.constant 0 : i32
    %c0_i32_0 = arith.constant 0 : i32
    %c0_i32_1 = arith.constant 0 : i32
    return %c0_i32, %c0_i32_0 : i32, i32
  }
  func.func @transform_7(%arg0: i32) -> (i32, i32) {
    %c0_i32 = arith.constant 0 : i32
    %c0_i32_0 = arith.constant 0 : i32
    %c0_i32_1 = arith.constant 0 : i32
    return %c0_i32, %c0_i32_0 : i32, i32
  }
  func.func @transform_8(%arg0: i32) -> (i32, i32) {
    %c0_i32 = arith.constant 0 : i32
    %c0_i32_0 = arith.constant 0 : i32
    %c0_i32_1 = arith.constant 0 : i32
    return %c0_i32, %c0_i32_0 : i32, i32
  }
  func.func @transform_9(%arg0: i32) -> (i32, i32) {
    %c0_i32 = arith.constant 0 : i32
    %c0_i32_0 = arith.constant 0 : i32
    return %arg0, %c0_i32 : i32, i32
  }
}

</mosaic_0001>

<llo_original>
// kernel: tpu_custom_call.1
$region0: #{tpu_custom_call.1}
  #allocation0 [shape = 'u32[]', space=smem, size = 0x4, offset = 0x4, fixed_abs, tag = 'smem constant byte address 0x4 - core index']
  #allocation1 [shape = 'u32[144,128]{1,0:T(1,128)}', space=vmem, size = 0x12000, scoped, tag = 'internal scratch']
  %s0 = inlined_call_operand.hbm [shape: bf16[16,32], index: 0, kind: input, shape index: {}]
  %s1 = inlined_call_operand.hbm [shape: bf16[16,32], index: 1, kind: input, shape index: {}]
  %s2 = inlined_call_operand.hbm [shape: bf16[16,32], index: 2, kind: input, shape index: {}]
  %s3 = inlined_call_operand.hbm [shape: f32[2,8,8], index: 3, kind: input, shape index: {}]
  %s4 = inlined_call_operand.hbm [shape: bf16[32,32], index: 4, kind: input, shape index: {}]
  %s5 = inlined_call_operand.vmem [shape: bf16[32,32], index: 5, kind: input, shape index: {}]
  %s6 = inlined_call_operand.hbm [shape: bf16[32,32], index: 6, kind: input, shape index: {}]
  %s7 = inlined_call_operand.hbm [shape: bf16[32,32], index: 7, kind: input, shape index: {}]
  %s8 = inlined_call_operand.vmem [shape: f32[1,32], index: 8, kind: input, shape index: {}]
  %s9 = inlined_call_operand.hbm [shape: f32[16,32], index: 9, kind: output, shape index: {}]
  %s10 = sld [smem:[#allocation0]]
  $region74: #{tpu_custom_call.1} parent=0
    _
  %s12 = ssub.s32 1, %s10
  %s13 = scalar_select 0, %s12, %s10
  $region1: #{tpu_custom_call.1} parent=0
    #allocation2 [shape = 'u8[4096]{0}', space=vmem, size = 0x1000, scoped, tag = 'input window, operand 0, single buffered']
    #allocation3 [shape = 's32[1]{0}', space=sflag, size = 0x4, scoped, tag = 'scoped memory for tpu_custom_call.1']
    #allocation4 [shape = 's32[1]{0}', space=sflag, size = 0x4, scoped, tag = 'scoped memory for tpu_custom_call.1']
    #allocation5 [shape = 'u8[4096]{0}', space=vmem, size = 0x1000, scoped, tag = 'input window, operand 1, single buffered']
    #allocation6 [shape = 's32[1]{0}', space=sflag, size = 0x4, scoped, tag = 'scoped memory for tpu_custom_call.1']
    #allocation7 [shape = 'u8[4096]{0}', space=vmem, size = 0x1000, scoped, tag = 'input window, operand 2, single buffered']
    #allocation8 [shape = 'u8[8192]{0}', space=vmem, size = 0x2000, scoped, tag = 'input window, operand 3, single buffered']
    #allocation9 [shape = 's32[1]{0}', space=sflag, size = 0x4, scoped, tag = 'scoped memory for tpu_custom_call.1']
    #allocation10 [shape = 'u8[8192]{0}', space=vmem, size = 0x2000, scoped, tag = 'input window, operand 4, single buffered']
    #allocation11 [shape = 'u8[8192]{0}', space=vmem, size = 0x2000, scoped, tag = 'input window, operand 6, single buffered']
    #allocation12 [shape = 's32[1]{0}', space=sflag, size = 0x4, scoped, tag = 'scoped memory for tpu_custom_call.1']
    #allocation13 [shape = 'u8[8192]{0}', space=vmem, size = 0x2000, scoped, tag = 'input window, operand 7, single buffered']
    #allocation14 [shape = 'u8[8192]{0}', space=vmem, size = 0x2000, scoped, tag = 'output window, operand 0, single buffered']
    %14 = vsyncpa [#allocation3], 0
    %15 = vsyncpa [#allocation6], 0
    %16 = vsyncpa [#allocation9], 0
    %17 = vsyncpa [#allocation12], 0
    %18 = vsyncpa [#allocation4], 0
    // Predicated region
    $region2: #{tpu_custom_call.1} parent=1 // pred_check
      _
    $region3: #{tpu_custom_call.1} parent=1 // pred_check_branch
      %20 = sbr.rel (0) target = $region5
    $region4: #{tpu_custom_call.1} parent=1 // pred_region
      %s22 = ssub.s32 128, 128
      %23 = vsyncadd [#allocation3], %s22
      %s24 = sshll.u32 [#allocation2], 4
      %s25 = int_to_ptr.vmem [resolvable:$true] %s24
      %30 = dma.hbm_to_vmem [thread:$0]  %s0, 128, %s25, [#allocation3], 64, 64, 4
    $region5: #{tpu_custom_call.1} parent=1 // pred_fallthru
      _
    // Predicated region
    $region6: #{tpu_custom_call.1} parent=1 // pred_check
      _
    $region7: #{tpu_custom_call.1} parent=1 // pred_check_branch
      %32 = sbr.rel (0) target = $region9
    $region8: #{tpu_custom_call.1} parent=1 // pred_region
      %s34 = ssub.s32 128, 128
      %35 = vsyncadd [#allocation6], %s34
      %s36 = sshll.u32 [#allocation5], 4
      %s37 = int_to_ptr.vmem [resolvable:$true] %s36
      %42 = dma.hbm_to_vmem [thread:$0]  %s1, 128, %s37, [#allocation6], 64, 64, 4
    $region9: #{tpu_custom_call.1} parent=1 // pred_fallthru
      _
    // Predicated region
    $region10: #{tpu_custom_call.1} parent=1 // pred_check
      _
    $region11: #{tpu_custom_call.1} parent=1 // pred_check_branch
      %44 = sbr.rel (0) target = $region13
    $region12: #{tpu_custom_call.1} parent=1 // pred_region
      %s46 = ssub.s32 128, 128
      %47 = vsyncadd [#allocation6], %s46
      %s48 = sshll.u32 [#allocation7], 4
      %s49 = int_to_ptr.vmem [resolvable:$true] %s48
      %54 = dma.hbm_to_vmem [thread:$0]  %s2, 128, %s49, [#allocation6], 64, 64, 4
    $region13: #{tpu_custom_call.1} parent=1 // pred_fallthru
      _
    // Predicated region
    $region14: #{tpu_custom_call.1} parent=1 // pred_check
      _
    $region15: #{tpu_custom_call.1} parent=1 // pred_check_branch
      %56 = sbr.rel (0) target = $region17
    $region16: #{tpu_custom_call.1} parent=1 // pred_region
      %s58 = ssub.s32 256, 256
      %59 = vsyncadd [#allocation9], %s58
      %s60 = sshll.u32 [#allocation8], 4
      %s61 = int_to_ptr.vmem [resolvable:$true] %s60
      %66 = dma.hbm_to_vmem [thread:$0]  %s3, 256, %s61, [#allocation9], 128, 128, 8
    $region17: #{tpu_custom_call.1} parent=1 // pred_fallthru
      _
    // Predicated region
    $region18: #{tpu_custom_call.1} parent=1 // pred_check
      _
    $region19: #{tpu_custom_call.1} parent=1 // pred_check_branch
      %68 = sbr.rel (0) target = $region21
    $region20: #{tpu_custom_call.1} parent=1 // pred_region
      %s70 = ssub.s32 256, 256
      %71 = vsyncadd [#allocation9], %s70
      %s72 = sshll.u32 [#allocation10], 4
      %s73 = int_to_ptr.vmem [resolvable:$true] %s72
      %78 = dma.hbm_to_vmem [thread:$0]  %s4, 256, %s73, [#allocation9], 64, 64, 4
    $region21: #{tpu_custom_call.1} parent=1 // pred_fallthru
      _
    // Predicated region
    $region22: #{tpu_custom_call.1} parent=1 // pred_check
      _
    $region23: #{tpu_custom_call.1} parent=1 // pred_check_branch
      %80 = sbr.rel (0) target = $region25
    $region24: #{tpu_custom_call.1} parent=1 // pred_region
      _
    $region25: #{tpu_custom_call.1} parent=1 // pred_fallthru
      _
    // Predicated region
    $region26: #{tpu_custom_call.1} parent=1 // pred_check
      _
    $region27: #{tpu_custom_call.1} parent=1 // pred_check_branch
      %82 = sbr.rel (0) target = $region29
    $region28: #{tpu_custom_call.1} parent=1 // pred_region
      %s84 = ssub.s32 256, 256
      %85 = vsyncadd [#allocation12], %s84
      %s86 = sshll.u32 [#allocation11], 4
      %s87 = int_to_ptr.vmem [resolvable:$true] %s86
      %92 = dma.hbm_to_vmem [thread:$0]  %s6, 256, %s87, [#allocation12], 64, 64, 4
    $region29: #{tpu_custom_call.1} parent=1 // pred_fallthru
      _
    // Predicated region
    $region30: #{tpu_custom_call.1} parent=1 // pred_check
      _
    $region31: #{tpu_custom_call.1} parent=1 // pred_check_branch
      %94 = sbr.rel (0) target = $region33
    $region32: #{tpu_custom_call.1} parent=1 // pred_region
      %s96 = ssub.s32 256, 256
      %97 = vsyncadd [#allocation12], %s96
      %s98 = sshll.u32 [#allocation13], 4
      %s99 = int_to_ptr.vmem [resolvable:$true] %s98
      %104 = dma.hbm_to_vmem [thread:$0]  %s7, 256, %s99, [#allocation12], 64, 64, 4
    $region33: #{tpu_custom_call.1} parent=1 // pred_fallthru
      _
    // Predicated region
    $region34: #{tpu_custom_call.1} parent=1 // pred_check
      _
    $region35: #{tpu_custom_call.1} parent=1 // pred_check_branch
      %106 = sbr.rel (0) target = $region37
    $region36: #{tpu_custom_call.1} parent=1 // pred_region
      _
    $region37: #{tpu_custom_call.1} parent=1 // pred_fallthru
      _
    // Predicated region
    $region38: #{tpu_custom_call.1} parent=1 // pred_check
      _
    $region39: #{tpu_custom_call.1} parent=1 // pred_check_branch
      %108 = sbr.rel (0) target = $region41
    $region40: #{tpu_custom_call.1} parent=1 // pred_region
      %109 = dma.done [#allocation3], 128
    $region41: #{tpu_custom_call.1} parent=1 // pred_fallthru
      _
    // Predicated region
    $region42: #{tpu_custom_call.1} parent=1 // pred_check
      _
    $region43: #{tpu_custom_call.1} parent=1 // pred_check_branch
      %111 = sbr.rel (0) target = $region45
    $region44: #{tpu_custom_call.1} parent=1 // pred_region
      %112 = dma.done [#allocation6], 128
    $region45: #{tpu_custom_call.1} parent=1 // pred_fallthru
      _
    // Predicated region
    $region46: #{tpu_custom_call.1} parent=1 // pred_check
      _
    $region47: #{tpu_custom_call.1} parent=1 // pred_check_branch
      %114 = sbr.rel (0) target = $region49
    $region48: #{tpu_custom_call.1} parent=1 // pred_region
      %115 = dma.done [#allocation6], 128
    $region49: #{tpu_custom_call.1} parent=1 // pred_fallthru
      _
    // Predicated region
    $region50: #{tpu_custom_call.1} parent=1 // pred_check
      _
    $region51: #{tpu_custom_call.1} parent=1 // pred_check_branch
      %117 = sbr.rel (0) target = $region53
    $region52: #{tpu_custom_call.1} parent=1 // pred_region
      %118 = dma.done [#allocation9], 256
    $region53: #{tpu_custom_call.1} parent=1 // pred_fallthru
      _
    // Predicated region
    $region54: #{tpu_custom_call.1} parent=1 // pred_check
      _
    $region55: #{tpu_custom_call.1} parent=1 // pred_check_branch
      %120 = sbr.rel (0) target = $region57
    $region56: #{tpu_custom_call.1} parent=1 // pred_region
      %121 = dma.done [#allocation9], 256
    $region57: #{tpu_custom_call.1} parent=1 // pred_fallthru
      _
    // Predicated region
    $region58: #{tpu_custom_call.1} parent=1 // pred_check
      _
    $region59: #{tpu_custom_call.1} parent=1 // pred_check_branch
      %123 = sbr.rel (0) target = $region61
    $region60: #{tpu_custom_call.1} parent=1 // pred_region
      %124 = dma.done [#allocation12], 256
    $region61: #{tpu_custom_call.1} parent=1 // pred_fallthru
      _
    // Predicated region
    $region62: #{tpu_custom_call.1} parent=1 // pred_check
      _
    $region63: #{tpu_custom_call.1} parent=1 // pred_check_branch
      %126 = sbr.rel (0) target = $region65
    $region64: #{tpu_custom_call.1} parent=1 // pred_region
      %127 = dma.done [#allocation12], 256
    $region65: #{tpu_custom_call.1} parent=1 // pred_fallthru
      _
    %v129 = vld [vmem:[#allocation2] sm:$0xf]
    %v130 = vld [vmem:[#allocation2 + $0x4] sm:$0xf]
    %v131 = vld [vmem:[#allocation10] sm:$0xf]
    %v132 = vld [vmem:[#allocation10 + $0x4] sm:$0xf]
    %v133 = vld [vmem:[#allocation10 + $0x8] sm:$0xf]
    %v134 = vld [vmem:[#allocation10 + $0xc] sm:$0xf]
    %v137 = vunpack.c.l.b16 %v129
    %v138 = vunpack.c.l.b16 %v130
    %v139 = vpack.c.b16 %v138, %v137
    %v144 = vunpack.c.l.b16 %v131
    %v145 = vunpack.c.l.b16 %v132
    %v146 = vunpack.c.l.b16 %v133
    %v147 = vunpack.c.l.b16 %v134
    %v148 = vpack.c.b16 %v145, %v144
    %v149 = vpack.c.b16 %v147, %v146
    %vm152 = vcmask 261120
    %v154 = vsel %vm152, %v139, 0
    %156 = vmatprep.subr.bf16.mxu0 0
    %157 = vmatpush1.bf16.msra.mxu0 %v148
    %158 = vmatprep.subr.bf16.mxu0 0
    %159 = vmatpush1.bf16.msra.mxu0 %v149
    %160 = vmatprep.subr.bf16.mxu0 0
    %161 = vmatpush1.bf16.msra.mxu0 0
    %162 = vmatprep.subr.bf16.mxu0 0
    %163 = vmatpush1.bf16.msra.mxu0 0
    %164 = vmatprep.subr.bf16.mxu0 0
    %165 = vmatpush1.bf16.msra.mxu0 0
    %166 = vmatprep.subr.bf16.mxu0 0
    %167 = vmatpush1.bf16.msra.mxu0 0
    %168 = vmatprep.subr.bf16.mxu0 0
    %169 = vmatpush1.bf16.msra.mxu0 0
    %170 = vmatprep.subr.bf16.mxu0 0
    %171 = vmatpush1.bf16.msra.mxu0 0
    %172 = vmatprep.subr.bf16.mxu0 0
    %173 = vmatpush1.bf16.msra.mxu0 0
    %174 = vmatprep.subr.bf16.mxu0 0
    %175 = vmatpush1.bf16.msra.mxu0 0
    %176 = vmatprep.subr.bf16.mxu0 0
    %177 = vmatpush1.bf16.msra.mxu0 0
    %178 = vmatprep.subr.bf16.mxu0 0
    %179 = vmatpush1.bf16.msra.mxu0 0
    %180 = vmatprep.subr.bf16.mxu0 0
    %181 = vmatpush1.bf16.msra.mxu0 0
    %182 = vmatprep.subr.bf16.mxu0 0
    %183 = vmatpush1.bf16.msra.mxu0 0
    %184 = vmatprep.subr.bf16.mxu0 0
    %185 = vmatpush1.bf16.msra.mxu0 0
    %186 = vmatprep.subr.bf16.mxu0 0
    %187 = vmatpush1.bf16.msra.mxu0 0
    %188 = vmatprep.mubr.bf16.mxu0 0
    %189 = vmatmul.mubr.bf16.gmra.mrb[0].mxu0 %v154
    %v190 = vpop.f32.mrb[0].mxu0
    %v191 = vadd.f32 0.0, %v190
    %v192 = vpop.f32.mrb[0].mxu0
    %v193 = vpop.f32.mrb[0].mxu0
    %v194 = vadd.f32 0.0, %v193
    %v195 = vpop.f32.mrb[0].mxu0
    %196 = vdwg.mxu0
    %v197 = vld [vmem:[#allocation5] sm:$0xf]
    %v198 = vld [vmem:[#allocation5 + $0x4] sm:$0xf]
    %v199 = vld [vmem:[%s5] sm:$0xf]
    %v200 = vld [vmem:[%s5 + $0x4] sm:$0xf]
    %v201 = vld [vmem:[%s5 + $0x8] sm:$0xf]
    %v202 = vld [vmem:[%s5 + $0xc] sm:$0xf]
    %v205 = vunpack.c.l.b16 %v197
    %v206 = vunpack.c.l.b16 %v198
    %v207 = vpack.c.b16 %v206, %v205
    %v212 = vunpack.c.l.b16 %v199
    %v213 = vunpack.c.l.b16 %v200
    %v214 = vunpack.c.l.b16 %v201
    %v215 = vunpack.c.l.b16 %v202
    %v216 = vpack.c.b16 %v213, %v212
    %v217 = vpack.c.b16 %v215, %v214
    %v221 = vsel %vm152, %v207, 0
    %223 = vmatprep.subr.bf16.mxu0 0
    %224 = vmatpush1.bf16.msra.mxu0 %v216
    %225 = vmatprep.subr.bf16.mxu0 0
    %226 = vmatpush1.bf16.msra.mxu0 %v217
    %227 = vmatprep.subr.bf16.mxu0 0
    %228 = vmatpush1.bf16.msra.mxu0 0
    %229 = vmatprep.subr.bf16.mxu0 0
    %230 = vmatpush1.bf16.msra.mxu0 0
    %231 = vmatprep.subr.bf16.mxu0 0
    %232 = vmatpush1.bf16.msra.mxu0 0
    %233 = vmatprep.subr.bf16.mxu0 0
    %234 = vmatpush1.bf16.msra.mxu0 0
    %235 = vmatprep.subr.bf16.mxu0 0
    %236 = vmatpush1.bf16.msra.mxu0 0
    %237 = vmatprep.subr.bf16.mxu0 0
    %238 = vmatpush1.bf16.msra.mxu0 0
    %239 = vmatprep.subr.bf16.mxu0 0
    %240 = vmatpush1.bf16.msra.mxu0 0
    %241 = vmatprep.subr.bf16.mxu0 0
    %242 = vmatpush1.bf16.msra.mxu0 0
    %243 = vmatprep.subr.bf16.mxu0 0
    %244 = vmatpush1.bf16.msra.mxu0 0
    %245 = vmatprep.subr.bf16.mxu0 0
    %246 = vmatpush1.bf16.msra.mxu0 0
    %247 = vmatprep.subr.bf16.mxu0 0
    %248 = vmatpush1.bf16.msra.mxu0 0
    %249 = vmatprep.subr.bf16.mxu0 0
    %250 = vmatpush1.bf16.msra.mxu0 0
    %251 = vmatprep.subr.bf16.mxu0 0
    %252 = vmatpush1.bf16.msra.mxu0 0
    %253 = vmatprep.subr.bf16.mxu0 0
    %254 = vmatpush1.bf16.msra.mxu0 0
    %255 = vmatprep.mubr.bf16.mxu0 0
    %256 = vmatmul.mubr.bf16.gmra.mrb[0].mxu0 %v221
    %v257 = vpop.f32.mrb[0].mxu0
    %v258 = vadd.f32 0.0, %v257
    %v259 = vpop.f32.mrb[0].mxu0
    %v260 = vpop.f32.mrb[0].mxu0
    %v261 = vadd.f32 0.0, %v260
    %v262 = vpop.f32.mrb[0].mxu0
    %263 = vdwg.mxu0
    %v264 = vld [vmem:[#allocation7] sm:$0xf]
    %v265 = vld [vmem:[#allocation7 + $0x4] sm:$0xf]
    %v266 = vld [vmem:[#allocation11] sm:$0xf]
    %v267 = vld [vmem:[#allocation11 + $0x4] sm:$0xf]
    %v268 = vld [vmem:[#allocation11 + $0x8] sm:$0xf]
    %v269 = vld [vmem:[#allocation11 + $0xc] sm:$0xf]
    %v272 = vunpack.c.l.b16 %v264
    %v273 = vunpack.c.l.b16 %v265
    %v274 = vpack.c.b16 %v273, %v272
    %v279 = vunpack.c.l.b16 %v266
    %v280 = vunpack.c.l.b16 %v267
    %v281 = vunpack.c.l.b16 %v268
    %v282 = vunpack.c.l.b16 %v269
    %v283 = vpack.c.b16 %v280, %v279
    %v284 = vpack.c.b16 %v282, %v281
    %v288 = vsel %vm152, %v274, 0
    %290 = vmatprep.subr.bf16.mxu0 0
    %291 = vmatpush1.bf16.msra.mxu0 %v283
    %292 = vmatprep.subr.bf16.mxu0 0
    %293 = vmatpush1.bf16.msra.mxu0 %v284
    %294 = vmatprep.subr.bf16.mxu0 0
    %295 = vmatpush1.bf16.msra.mxu0 0
    %296 = vmatprep.subr.bf16.mxu0 0
    %297 = vmatpush1.bf16.msra.mxu0 0
    %298 = vmatprep.subr.bf16.mxu0 0
    %299 = vmatpush1.bf16.msra.mxu0 0
    %300 = vmatprep.subr.bf16.mxu0 0
    %301 = vmatpush1.bf16.msra.mxu0 0
    %302 = vmatprep.subr.bf16.mxu0 0
    %303 = vmatpush1.bf16.msra.mxu0 0
    %304 = vmatprep.subr.bf16.mxu0 0
    %305 = vmatpush1.bf16.msra.mxu0 0
    %306 = vmatprep.subr.bf16.mxu0 0
    %307 = vmatpush1.bf16.msra.mxu0 0
    %308 = vmatprep.subr.bf16.mxu0 0
    %309 = vmatpush1.bf16.msra.mxu0 0
    %310 = vmatprep.subr.bf16.mxu0 0
    %311 = vmatpush1.bf16.msra.mxu0 0
    %312 = vmatprep.subr.bf16.mxu0 0
    %313 = vmatpush1.bf16.msra.mxu0 0
    %314 = vmatprep.subr.bf16.mxu0 0
    %315 = vmatpush1.bf16.msra.mxu0 0
    %316 = vmatprep.subr.bf16.mxu0 0
    %317 = vmatpush1.bf16.msra.mxu0 0
    %318 = vmatprep.subr.bf16.mxu0 0
    %319 = vmatpush1.bf16.msra.mxu0 0
    %320 = vmatprep.subr.bf16.mxu0 0
    %321 = vmatpush1.bf16.msra.mxu0 0
    %322 = vmatprep.mubr.bf16.mxu0 0
    %323 = vmatmul.mubr.bf16.gmra.mrb[0].mxu0 %v288
    %v324 = vpop.f32.mrb[0].mxu0
    %v325 = vadd.f32 0.0, %v324
    %v326 = vpop.f32.mrb[0].mxu0
    %v327 = vpop.f32.mrb[0].mxu0
    %v328 = vadd.f32 0.0, %v327
    %v329 = vpop.f32.mrb[0].mxu0
    %330 = vdwg.mxu0
    %v331 = vpack.c.bf16 %v194, %v191
    %v332 = vpack.c.bf16 %v261, %v258
    %v333 = vpack.c.bf16 %v328, %v325
    %v334 = vld [vmem:[#allocation8] sm:$0xff]
    %v336 = vsel %vm152, %v333, 0
    %v339 = vsel %vm152, %v332, 0
    %341 = vmatprep.subr.bf16.mxu0 0
    %342 = vmatpush1.bf16.xpose.msra.mxu0 %v339
    %343 = vmatprep.subr.bf16.mxu0 0
    %344 = vmatpush1.bf16.xpose.msra.mxu0 0
    %345 = vmatprep.subr.bf16.mxu0 0
    %346 = vmatpush1.bf16.xpose.msra.mxu0 0
    %347 = vmatprep.subr.bf16.mxu0 0
    %348 = vmatpush1.bf16.xpose.msra.mxu0 0
    %349 = vmatprep.subr.bf16.mxu0 0
    %350 = vmatpush1.bf16.xpose.msra.mxu0 0
    %351 = vmatprep.subr.bf16.mxu0 0
    %352 = vmatpush1.bf16.xpose.msra.mxu0 0
    %353 = vmatprep.subr.bf16.mxu0 0
    %354 = vmatpush1.bf16.xpose.msra.mxu0 0
    %355 = vmatprep.subr.bf16.mxu0 0
    %356 = vmatpush1.bf16.xpose.msra.mxu0 0
    %357 = vmatprep.subr.bf16.mxu0 0
    %358 = vmatpush1.bf16.xpose.msra.mxu0 0
    %359 = vmatprep.subr.bf16.mxu0 0
    %360 = vmatpush1.bf16.xpose.msra.mxu0 0
    %361 = vmatprep.subr.bf16.mxu0 0
    %362 = vmatpush1.bf16.xpose.msra.mxu0 0
    %363 = vmatprep.subr.bf16.mxu0 0
    %364 = vmatpush1.bf16.xpose.msra.mxu0 0
    %365 = vmatprep.subr.bf16.mxu0 0
    %366 = vmatpush1.bf16.xpose.msra.mxu0 0
    %367 = vmatprep.subr.bf16.mxu0 0
    %368 = vmatpush1.bf16.xpose.msra.mxu0 0
    %369 = vmatprep.subr.bf16.mxu0 0
    %370 = vmatpush1.bf16.xpose.msra.mxu0 0
    %371 = vmatprep.subr.bf16.mxu0 0
    %372 = vmatpush1.bf16.xpose.msra.mxu0 0
    %373 = vmatprep.mubr.bf16.mxu0 0
    %374 = vmatmul.mubr.bf16.gmra.mrb[0].mxu0 %v336
    %v375 = vpop.f32.mrb[0].mxu0
    %v376 = vadd.f32 %v334, %v375
    %v377 = vpop.f32.mrb[0].mxu0
    %v378 = vpop.f32.mrb[0].mxu0
    %v379 = vpop.f32.mrb[0].mxu0
    %380 = vdwg.mxu0
    %vm381 = vcmask 64512
    %v382 = vsel %vm381, %v376, -inf
    %383 = vmax.xlane.f32.xlu0 %v382
    %v384 = vpop.xlane.xlu0 %383
    %v385 = vsub.f32 %v376, %v384
    %v386 = vmul.f32 %v385, 1.442695
    %v387 = vpow.pop %v386
    %v388 = vsel %vm381, %v387, 0.0
    %389 = vadd.xlane.f32.xlu0 %v388
    %v390 = vpop.xlane.xlu0 %389
    %v391 = vrcp.pop %v390
    %v392 = vmul.f32 %v387, %v391
    %v393 = vpack.c.bf16 %v392, %v392
    %v395 = vsel %vm381, %v393, 0
    %vm397 = vcmask 1043456
    %v399 = vsel %vm397, %v331, 0
    %401 = vmatprep.subr.bf16.mxu0 0
    %402 = vmatpush1.bf16.msra.mxu0 %v399
    %403 = vmatprep.subr.bf16.mxu0 0
    %404 = vmatpush1.bf16.msra.mxu0 0
    %405 = vmatprep.subr.bf16.mxu0 0
    %406 = vmatpush1.bf16.msra.mxu0 0
    %407 = vmatprep.subr.bf16.mxu0 0
    %408 = vmatpush1.bf16.msra.mxu0 0
    %409 = vmatprep.subr.bf16.mxu0 0
    %410 = vmatpush1.bf16.msra.mxu0 0
    %411 = vmatprep.subr.bf16.mxu0 0
    %412 = vmatpush1.bf16.msra.mxu0 0
    %413 = vmatprep.subr.bf16.mxu0 0
    %414 = vmatpush1.bf16.msra.mxu0 0
    %415 = vmatprep.subr.bf16.mxu0 0
    %416 = vmatpush1.bf16.msra.mxu0 0
    %417 = vmatprep.subr.bf16.mxu0 0
    %418 = vmatpush1.bf16.msra.mxu0 0
    %419 = vmatprep.subr.bf16.mxu0 0
    %420 = vmatpush1.bf16.msra.mxu0 0
    %421 = vmatprep.subr.bf16.mxu0 0
    %422 = vmatpush1.bf16.msra.mxu0 0
    %423 = vmatprep.subr.bf16.mxu0 0
    %424 = vmatpush1.bf16.msra.mxu0 0
    %425 = vmatprep.subr.bf16.mxu0 0
    %426 = vmatpush1.bf16.msra.mxu0 0
    %427 = vmatprep.subr.bf16.mxu0 0
    %428 = vmatpush1.bf16.msra.mxu0 0
    %429 = vmatprep.subr.bf16.mxu0 0
    %430 = vmatpush1.bf16.msra.mxu0 0
    %431 = vmatprep.subr.bf16.mxu0 0
    %432 = vmatpush1.bf16.msra.mxu0 0
    %433 = vmatprep.mubr.bf16.mxu0 0
    %434 = vmatmul.mubr.bf16.gmra.mrb[0].mxu0 %v395
    %v435 = vpop.f32.mrb[0].mxu0
    %v436 = vadd.f32 0.0, %v435
    %v437 = vpop.f32.mrb[0].mxu0
    %v438 = vpop.f32.mrb[0].mxu0
    %v439 = vpop.f32.mrb[0].mxu0
    %440 = vdwg.mxu0
    %s441 = scalar_lea.vmem [#allocation8], 8
    %v442 = vld [vmem:[%s441] sm:$0xff]
    %v444 = vrot.slane %v333, 4
    %v446 = vrot.slane %v332, 4
    %v448 = vsel %vm152, %v444, 0
    %v451 = vsel %vm152, %v446, 0
    %453 = vmatprep.subr.bf16.mxu0 0
    %454 = vmatpush1.bf16.xpose.msra.mxu0 %v451
    %455 = vmatprep.subr.bf16.mxu0 0
    %456 = vmatpush1.bf16.xpose.msra.mxu0 0
    %457 = vmatprep.subr.bf16.mxu0 0
    %458 = vmatpush1.bf16.xpose.msra.mxu0 0
    %459 = vmatprep.subr.bf16.mxu0 0
    %460 = vmatpush1.bf16.xpose.msra.mxu0 0
    %461 = vmatprep.subr.bf16.mxu0 0
    %462 = vmatpush1.bf16.xpose.msra.mxu0 0
    %463 = vmatprep.subr.bf16.mxu0 0
    %464 = vmatpush1.bf16.xpose.msra.mxu0 0
    %465 = vmatprep.subr.bf16.mxu0 0
    %466 = vmatpush1.bf16.xpose.msra.mxu0 0
    %467 = vmatprep.subr.bf16.mxu0 0
    %468 = vmatpush1.bf16.xpose.msra.mxu0 0
    %469 = vmatprep.subr.bf16.mxu0 0
    %470 = vmatpush1.bf16.xpose.msra.mxu0 0
    %471 = vmatprep.subr.bf16.mxu0 0
    %472 = vmatpush1.bf16.xpose.msra.mxu0 0
    %473 = vmatprep.subr.bf16.mxu0 0
    %474 = vmatpush1.bf16.xpose.msra.mxu0 0
    %475 = vmatprep.subr.bf16.mxu0 0
    %476 = vmatpush1.bf16.xpose.msra.mxu0 0
    %477 = vmatprep.subr.bf16.mxu0 0
    %478 = vmatpush1.bf16.xpose.msra.mxu0 0
    %479 = vmatprep.subr.bf16.mxu0 0
    %480 = vmatpush1.bf16.xpose.msra.mxu0 0
    %481 = vmatprep.subr.bf16.mxu0 0
    %482 = vmatpush1.bf16.xpose.msra.mxu0 0
    %483 = vmatprep.subr.bf16.mxu0 0
    %484 = vmatpush1.bf16.xpose.msra.mxu0 0
    %485 = vmatprep.mubr.bf16.mxu0 0
    %486 = vmatmul.mubr.bf16.gmra.mrb[0].mxu0 %v448
    %v487 = vpop.f32.mrb[0].mxu0
    %v488 = vadd.f32 %v442, %v487
    %v489 = vpop.f32.mrb[0].mxu0
    %v490 = vpop.f32.mrb[0].mxu0
    %v491 = vpop.f32.mrb[0].mxu0
    %492 = vdwg.mxu0
    %v493 = vsel %vm381, %v488, -inf
    %494 = vmax.xlane.f32.xlu0 %v493
    %v495 = vpop.xlane.xlu0 %494
    %v496 = vsub.f32 %v488, %v495
    %v497 = vmul.f32 %v496, 1.442695
    %v498 = vpow.pop %v497
    %v499 = vsel %vm381, %v498, 0.0
    %500 = vadd.xlane.f32.xlu0 %v499
    %v501 = vpop.xlane.xlu0 %500
    %v502 = vrcp.pop %v501
    %v503 = vmul.f32 %v498, %v502
    %v504 = vpack.c.bf16 %v503, %v503
    %v506 = vrot.slane %v331, 4
    %v508 = vsel %vm381, %v504, 0
    %v511 = vsel %vm397, %v506, 0
    %513 = vmatprep.subr.bf16.mxu0 0
    %514 = vmatpush1.bf16.msra.mxu0 %v511
    %515 = vmatprep.subr.bf16.mxu0 0
    %516 = vmatpush1.bf16.msra.mxu0 0
    %517 = vmatprep.subr.bf16.mxu0 0
    %518 = vmatpush1.bf16.msra.mxu0 0
    %519 = vmatprep.subr.bf16.mxu0 0
    %520 = vmatpush1.bf16.msra.mxu0 0
    %521 = vmatprep.subr.bf16.mxu0 0
    %522 = vmatpush1.bf16.msra.mxu0 0
    %523 = vmatprep.subr.bf16.mxu0 0
    %524 = vmatpush1.bf16.msra.mxu0 0
    %525 = vmatprep.subr.bf16.mxu0 0
    %526 = vmatpush1.bf16.msra.mxu0 0
    %527 = vmatprep.subr.bf16.mxu0 0
    %528 = vmatpush1.bf16.msra.mxu0 0
    %529 = vmatprep.subr.bf16.mxu0 0
    %530 = vmatpush1.bf16.msra.mxu0 0
    %531 = vmatprep.subr.bf16.mxu0 0
    %532 = vmatpush1.bf16.msra.mxu0 0
    %533 = vmatprep.subr.bf16.mxu0 0
    %534 = vmatpush1.bf16.msra.mxu0 0
    %535 = vmatprep.subr.bf16.mxu0 0
    %536 = vmatpush1.bf16.msra.mxu0 0
    %537 = vmatprep.subr.bf16.mxu0 0
    %538 = vmatpush1.bf16.msra.mxu0 0
    %539 = vmatprep.subr.bf16.mxu0 0
    %540 = vmatpush1.bf16.msra.mxu0 0
    %541 = vmatprep.subr.bf16.mxu0 0
    %542 = vmatpush1.bf16.msra.mxu0 0
    %543 = vmatprep.subr.bf16.mxu0 0
    %544 = vmatpush1.bf16.msra.mxu0 0
    %545 = vmatprep.mubr.bf16.mxu0 0
    %546 = vmatmul.mubr.bf16.gmra.mrb[0].mxu0 %v508
    %v547 = vpop.f32.mrb[0].mxu0
    %v548 = vadd.f32 0.0, %v547
    %v549 = vpop.f32.mrb[0].mxu0
    %v550 = vpop.f32.mrb[0].mxu0
    %v551 = vpop.f32.mrb[0].mxu0
    %552 = vdwg.mxu0
    %v553 = vpack.c.bf16 %v548, %v436
    %v554 = vld [vmem:[#allocation13] sm:$0xf]
    %v555 = vld [vmem:[#allocation13 + $0x4] sm:$0xf]
    %v556 = vld [vmem:[#allocation13 + $0x8] sm:$0xf]
    %v557 = vld [vmem:[#allocation13 + $0xc] sm:$0xf]
    %v558 = vld [vmem:[%s8] sm:$0x1]
    %v560 = vlaneseq
    %v561 = vshrl.u32 %v560, 7
    %v562 = vsub.s32 0, %v561
    %v563 = vrot.slane %v558, %v562
    %v569 = vunpack.c.l.b16 %v554
    %v570 = vunpack.c.l.b16 %v555
    %v571 = vunpack.c.l.b16 %v556
    %v572 = vunpack.c.l.b16 %v557
    %v573 = vpack.c.b16 %v570, %v569
    %v574 = vpack.c.b16 %v572, %v571
    %v578 = vsel %vm152, %v553, 0
    %580 = vmatprep.subr.bf16.mxu0 0
    %581 = vmatpush1.bf16.msra.mxu0 %v573
    %582 = vmatprep.subr.bf16.mxu0 0
    %583 = vmatpush1.bf16.msra.mxu0 %v574
    %584 = vmatprep.subr.bf16.mxu0 0
    %585 = vmatpush1.bf16.msra.mxu0 0
    %586 = vmatprep.subr.bf16.mxu0 0
    %587 = vmatpush1.bf16.msra.mxu0 0
    %588 = vmatprep.subr.bf16.mxu0 0
    %589 = vmatpush1.bf16.msra.mxu0 0
    %590 = vmatprep.subr.bf16.mxu0 0
    %591 = vmatpush1.bf16.msra.mxu0 0
    %592 = vmatprep.subr.bf16.mxu0 0
    %593 = vmatpush1.bf16.msra.mxu0 0
    %594 = vmatprep.subr.bf16.mxu0 0
    %595 = vmatpush1.bf16.msra.mxu0 0
    %596 = vmatprep.subr.bf16.mxu0 0
    %597 = vmatpush1.bf16.msra.mxu0 0
    %598 = vmatprep.subr.bf16.mxu0 0
    %599 = vmatpush1.bf16.msra.mxu0 0
    %600 = vmatprep.subr.bf16.mxu0 0
    %601 = vmatpush1.bf16.msra.mxu0 0
    %602 = vmatprep.subr.bf16.mxu0 0
    %603 = vmatpush1.bf16.msra.mxu0 0
    %604 = vmatprep.subr.bf16.mxu0 0
    %605 = vmatpush1.bf16.msra.mxu0 0
    %606 = vmatprep.subr.bf16.mxu0 0
    %607 = vmatpush1.bf16.msra.mxu0 0
    %608 = vmatprep.subr.bf16.mxu0 0
    %609 = vmatpush1.bf16.msra.mxu0 0
    %610 = vmatprep.subr.bf16.mxu0 0
    %611 = vmatpush1.bf16.msra.mxu0 0
    %612 = vmatprep.mubr.bf16.mxu0 0
    %613 = vmatmul.mubr.bf16.gmra.mrb[0].mxu0 %v578
    %v614 = vpop.f32.mrb[0].mxu0
    %v615 = vadd.f32 %v563, %v614
    %v616 = vpop.f32.mrb[0].mxu0
    %v617 = vpop.f32.mrb[0].mxu0
    %v618 = vadd.f32 %v563, %v617
    %v619 = vpop.f32.mrb[0].mxu0
    %620 = vdwg.mxu0
    %621 = vst.msk [vmem:[#allocation14] sm:$0xff] %vm152, %v615
    %622 = vst.msk [vmem:[#allocation14 + $0x8] sm:$0xff] %vm152, %v618
    // Predicated region
    $region66: #{tpu_custom_call.1} parent=1 // pred_check
      _
    $region67: #{tpu_custom_call.1} parent=1 // pred_check_branch
      %624 = sbr.rel (0) target = $region69
    $region68: #{tpu_custom_call.1} parent=1 // pred_region
      %s626 = ssub.s32 256, 256
      %627 = vsyncadd [#allocation4], %s626
      %s628 = sshll.u32 [#allocation14], 4
      %s629 = int_to_ptr.vmem [resolvable:$true] %s628
      %634 = dma.vmem_to_hbm [thread:$0]  %s629, 256, %s9, [#allocation4], 128, 128, 8
    $region69: #{tpu_custom_call.1} parent=1 // pred_fallthru
      _
    // Predicated region
    $region70: #{tpu_custom_call.1} parent=1 // pred_check
      _
    $region71: #{tpu_custom_call.1} parent=1 // pred_check_branch
      %636 = sbr.rel (0) target = $region73
    $region72: #{tpu_custom_call.1} parent=1 // pred_region
      %637 = dma.done [#allocation4], 256
    $region73: #{tpu_custom_call.1} parent=1 // pred_fallthru
      _
    %638 = vsyncpa [#allocation3], 1
    %639 = vsyncpa [#allocation6], 1
    %640 = vsyncpa [#allocation9], 1
    %641 = vsyncpa [#allocation12], 1
    %642 = vsyncpa [#allocation4], 1

</llo_original>
